<compile_context>
chip_gen: v6e
topology: v6e:2x2x1
jax: 0.10.0
libtpu: 0.0.40
codegen_flags: <defaults>
</compile_context>

<pallas_src>
import math
from functools import partial

import jax
import jax.numpy as jnp
from jax import lax
from jax.experimental import pallas as pl
from jax.experimental.pallas import tpu as pltpu


def _round_up(x, m):
    return (x + m - 1) // m * m


def _vmem_tile_bytes(rows, cols, itemsize):
    """VMEM footprint of one tile, padded to (sublane, 128-lane) granularity."""
    sub = 16 if itemsize == 2 else 8
    return _round_up(max(rows, 1), sub) * _round_up(max(cols, 1), 128) * itemsize


# -----------------------------------------------------------------------------
# Pallas kernel
# -----------------------------------------------------------------------------
def make_neumf_kernel(num_layers):
    """Fused NeuMF forward: GMF product + MLP stack + prediction reduction."""

    def kernel(*refs):
        # refs layout:
        #   u_packed, i_packed                      ((TB, F+E) bf16, [GMF|MLP])
        #   w0_user, w0_item, b0                    (first MLP layer, GMF rows zeroed)
        #   (w_l, b_l) * (num_layers - 1)
        #   w_pred_gmf ((8, F+E), lanes >= F zero), w_pred_mlp ((8, F))
        #   pred_b (SMEM scalar)
        #   out ((1, TB) lane-dense row)
        u_ref, i_ref = refs[0:2]
        w0u_ref, w0i_ref, b0_ref = refs[2:5]
        idx = 5
        w_refs, b_refs = [], []
        for _ in range(num_layers - 1):
            w_refs.append(refs[idx])
            b_refs.append(refs[idx + 1])
            idx += 2
        wpg_ref, wpm_ref, bp_ref, out_ref = refs[idx:idx + 4]

        f32, bf16 = jnp.float32, jnp.bfloat16

        u = u_ref[...]                       # (TB, F+E) bf16
        it = i_ref[...]                      # (TB, F+E) bf16

        # ---- GMF branch: elementwise product over the whole packed row (VPU).
        # Only the first F lanes are ever read by the prediction contraction
        # (w_pred_gmf is zero elsewhere), so no lane slicing is needed.
        prod = u * it                        # (TB, F+E) bf16

        # ---- MLP branch. The first layer consumes the packed rows directly:
        # its user/item weight halves have zero rows over the GMF lanes, so
        # u_packed @ w0u == mlp_u @ W0[:E] (and likewise for the item side).
        # bf16 matmul inputs, f32 accumulation (MXU-native on v5e/v6e/v7x).
        h = jnp.dot(u, w0u_ref[...], preferred_element_type=f32)
        h = h + jnp.dot(it, w0i_ref[...], preferred_element_type=f32)
        h = jnp.maximum(h + b0_ref[...], 0.0)                        # ReLU
        for l in range(num_layers - 1):
            h = jnp.dot(h.astype(bf16), w_refs[l][...], preferred_element_type=f32)
            h = jnp.maximum(h + b_refs[l][...], 0.0)
        # Dropout(p=0.0) in eval mode is the identity.

        # ---- Prediction layer: contract the feature axis with the batch as
        # the matmul N dimension (q @ k^T style dot_general), producing a
        # lane-dense (.., TB) row directly -- no (GMF, MLP) concat.
        dn = (((1,), (1,)), ((), ()))        # contract last dim of both
        pred = lax.dot_general(wpg_ref[...], prod, dn, preferred_element_type=f32)
        pred = pred + lax.dot_general(wpm_ref[...], h.astype(bf16), dn,
                                      preferred_element_type=f32)
        out_ref[...] = pred[0:1, :] + bp_ref[0]    # (1, TB) unmasked lane store

    return kernel


# -----------------------------------------------------------------------------
# One-time parameter packing for inference (do NOT re-run per step)
# -----------------------------------------------------------------------------
def prepare_params(params, num_layers):
    F = params["embed_user_GMF"].shape[1]
    E = params["embed_user_MLP"].shape[1]
    bf16 = jnp.bfloat16
    prepped = {}

    # Packed embedding tables [GMF | MLP] per user / item, bf16: 2 wide gathers
    # instead of 4 narrow f32 ones, and half the activation DMA bytes.
    prepped["user_table"] = jnp.concatenate(
        [params["embed_user_GMF"], params["embed_user_MLP"]], axis=1).astype(bf16)
    prepped["item_table"] = jnp.concatenate(
        [params["embed_item_GMF"], params["embed_item_MLP"]], axis=1).astype(bf16)

    # First MLP layer (in, out): split into user/item halves and zero-pad the
    # GMF lanes so the packed activation rows feed the MXU with no slicing.
    w0 = params["mlp_w0"]
    prepped["w0u"] = jnp.zeros((F + E, E), jnp.float32).at[F:].set(w0[:E]).astype(bf16)
    prepped["w0i"] = jnp.zeros((F + E, E), jnp.float32).at[F:].set(w0[E:]).astype(bf16)
    prepped["b0"] = params["mlp_b0"]
    for l in range(1, num_layers):
        prepped[f"w{l}"] = params[f"mlp_w{l}"].astype(bf16)
        prepped[f"b{l}"] = params[f"mlp_b{l}"]

    # Prediction weight halves: sublane-padded to 8 rows (row 0 real); the GMF
    # half is lane-padded to the packed width so it contracts the full packed
    # GMF product (zeros over the MLP lanes).
    wp = params["pred_w"][:, 0]
    prepped["wpg"] = (jnp.zeros((8, F + E), jnp.float32)
                      .at[0, :F].set(wp[:F]).astype(bf16))
    prepped["wpm"] = (jnp.zeros((8, F), jnp.float32)
                      .at[0].set(wp[F:]).astype(bf16))
    prepped["pred_b"] = params["pred_b"].reshape((1,))      # scalar bias -> SMEM
    return prepped


# -----------------------------------------------------------------------------
# Forward wrapper
# -----------------------------------------------------------------------------
def neumf_forward(prepped, user, item, *, num_layers, tile_batch=1024):
    packed_width = prepped["user_table"].shape[1]           # F + E

    batch = user.shape[0]
    b128 = _round_up(batch, 128)
    # Batch tile: multiple of 128 (unmasked lane-dense output stores); large
    # (default 1024, sweep 1024-2048) so the ~0.35 us per-grid-step overhead
    # amortizes over the tiny per-tile work.
    tb = min(_round_up(tile_batch, 128), b128)
    # Keep >= 2 grid steps when the batch allows: the batch axis is "parallel"
    # and v7x has 2 TensorCores -- a 1-step grid would leave one idle.
    if b128 >= 256 and pl.cdiv(b128, tb) < 2:
        tb = _round_up(pl.cdiv(b128, 2), 128)
    b_pad = _round_up(batch, tb)
    pad = b_pad - batch

    # Pad index vectors (row 0 is always a valid embedding row); padded
    # predictions are sliced off at the end.
    user_p = jnp.pad(user, (0, pad)) if pad else user
    item_p = jnp.pad(item, (0, pad)) if pad else item

    # Two wide bf16 gathers (packed [GMF|MLP] rows) in plain JAX glue.
    # TODO(synk): fully fuse the gathers into the kernel (PrefetchScalarGridSpec
    # + per-row DMA) to remove the remaining gather->HBM->kernel round-trip.
    u_feat = jnp.take(prepped["user_table"], user_p, axis=0)   # (B_pad, F+E) bf16
    i_feat = jnp.take(prepped["item_table"], item_p, axis=0)   # (B_pad, F+E) bf16

    consts = [prepped["w0u"], prepped["w0i"], prepped["b0"]]
    for l in range(1, num_layers):
        consts.append(prepped[f"w{l}"])
        consts.append(prepped[f"b{l}"])
    consts += [prepped["wpg"], prepped["wpm"]]

    kernel_inputs = [u_feat, i_feat] + consts + [prepped["pred_b"]]

    # Activation tiles: batch-tiled, double-buffered by the BlockSpec pipeline.
    # (If xprof ever shows exposed activation DMA, add pipeline_mode=
    # pl.Buffered(3) here -- not needed by default.)
    act_spec = pl.BlockSpec((tb, packed_width), lambda b: (b, 0))

    def const_spec(a):
        return pl.BlockSpec(a.shape, lambda b: (0, 0))       # VMEM-resident

    in_specs = [act_spec, act_spec]
    in_specs += [const_spec(a) for a in consts]
    in_specs += [pl.BlockSpec(memory_space=pltpu.MemorySpace.SMEM)]   # pred_b

    out_shape = jax.ShapeDtypeStruct((1, b_pad), jnp.float32)
    out_spec = pl.BlockSpec((1, tb), lambda b: (0, b))

    # VMEM budget from lane/sublane-PADDED tile sizes (feature dims of 8/32/40
    # still occupy full 128-lane tiles in VMEM). Cap well under v7x's 64 MiB.
    act_tile = 2 * _vmem_tile_bytes(tb, packed_width, 2)      # u_feat, i_feat
    out_tile = _vmem_tile_bytes(1, tb, 4)
    const_bytes = sum(_vmem_tile_bytes(a.shape[0], a.shape[1], a.dtype.itemsize)
                      for a in consts)
    interm_bytes = 8 * _vmem_tile_bytes(tb, 128, 4)           # prod/h/pred temps
    vmem_est = 2 * (act_tile + out_tile) + const_bytes + interm_bytes
    vmem_limit = int(min(max(2 * vmem_est, 16 << 20), 40 << 20))

    out = pl.pallas_call(
        make_neumf_kernel(num_layers),
        out_shape=out_shape,
        grid=(b_pad // tb,),
        in_specs=in_specs,
        out_specs=out_spec,
        compiler_params=pltpu.CompilerParams(
            dimension_semantics=("parallel",),   # shard batch tiles across TCs
            vmem_limit_bytes=vmem_limit),
    )(*kernel_inputs)

    # prediction.view(-1)
    return out[0, :batch]


# -----------------------------------------------------------------------------
# Deterministic parameter initialization (mirrors NeuMF._init_weight_)
# -----------------------------------------------------------------------------
def init_params(key, user_num, item_num, factor_num, num_layers):
    params = {}
    keys = jax.random.split(key, 16)
    ki = iter(range(16))

    mlp_embed = factor_num * 2 ** (num_layers - 1)

    # Embeddings: normal(std=0.01)
    params["embed_user_GMF"] = 0.01 * jax.random.normal(
        keys[next(ki)], (user_num, factor_num), jnp.float32)
    params["embed_item_GMF"] = 0.01 * jax.random.normal(
        keys[next(ki)], (item_num, factor_num), jnp.float32)
    params["embed_user_MLP"] = 0.01 * jax.random.normal(
        keys[next(ki)], (user_num, mlp_embed), jnp.float32)
    params["embed_item_MLP"] = 0.01 * jax.random.normal(
        keys[next(ki)], (item_num, mlp_embed), jnp.float32)

    # MLP linears: xavier_uniform weights, zero bias. Stored as (in, out).
    for i in range(num_layers):
        in_size = factor_num * 2 ** (num_layers - i)
        out_size = in_size // 2
        bound = math.sqrt(6.0 / (in_size + out_size))
        params[f"mlp_w{i}"] = jax.random.uniform(
            keys[next(ki)], (in_size, out_size), jnp.float32, -bound, bound)
        params[f"mlp_b{i}"] = jnp.zeros((1, out_size), jnp.float32)

    # Predict layer: kaiming_uniform(a=1, nonlinearity='sigmoid') -> gain = 1.
    predict_size = factor_num * 2
    bound = math.sqrt(3.0) / math.sqrt(predict_size)
    params["pred_w"] = jax.random.uniform(
        keys[next(ki)], (predict_size, 1), jnp.float32, -bound, bound)
    params["pred_b"] = jnp.zeros((1,), jnp.float32)

    return params


# -----------------------------------------------------------------------------
# Pure-JAX reference (same math, all f32) for a sanity check.
# -----------------------------------------------------------------------------
def neumf_reference(params, user, item, *, num_layers):
    gmf = (jnp.take(params["embed_user_GMF"], user, axis=0)
           * jnp.take(params["embed_item_GMF"], item, axis=0))
    x = jnp.concatenate(
        [jnp.take(params["embed_user_MLP"], user, axis=0),
         jnp.take(params["embed_item_MLP"], item, axis=0)], axis=-1)
    for l in range(num_layers):
        x = jnp.maximum(x @ params[f"mlp_w{l}"] + params[f"mlp_b{l}"], 0.0)
    concat = jnp.concatenate([gmf, x], axis=-1)
    return (concat @ params["pred_w"] + params["pred_b"]).reshape(-1)


if __name__ == "__main__":
    # Small, forward-consistent shapes.
    user_num, item_num = 32, 48
    factor_num, num_layers = 8, 3
    batch = 8

    key = jax.random.PRNGKey(0)
    pkey, ukey, ikey = jax.random.split(key, 3)

    params = init_params(pkey, user_num, item_num, factor_num, num_layers)
    user = jax.random.randint(ukey, (batch,), 0, user_num, dtype=jnp.int32)
    item = jax.random.randint(ikey, (batch,), 0, item_num, dtype=jnp.int32)

    # One-time packing of tables / weights for the fused kernel.
    prepped = prepare_params(params, num_layers)

    fwd = jax.jit(partial(neumf_forward, num_layers=num_layers))
    pred = fwd(prepped, user, item)
    jax.block_until_ready(pred)

    ref = neumf_reference(params, user, item, num_layers=num_layers)
    assert pred.shape == (batch,)
    # Embeddings / matmul inputs are bf16 (f32 accumulation) -> loose tolerance.
    assert jnp.allclose(pred, ref, atol=2e-3, rtol=2e-2), (pred, ref)

    print("KERNEL_OK")
</pallas_src>

<mosaic_0001>
module attributes {stable_mosaic.version = 11 : i64} {
  func.func @kernel(%arg0: i32, %arg1: memref<128x40xbf16, #tpu.memory_space<vmem>>, %arg2: memref<128x40xbf16, #tpu.memory_space<vmem>>, %arg3: memref<40x32xbf16, #tpu.memory_space<vmem>>, %arg4: memref<40x32xbf16, #tpu.memory_space<vmem>>, %arg5: memref<1x32xf32, #tpu.memory_space<vmem>>, %arg6: memref<32x16xbf16, #tpu.memory_space<vmem>>, %arg7: memref<1x16xf32, #tpu.memory_space<vmem>>, %arg8: memref<16x8xbf16, #tpu.memory_space<vmem>>, %arg9: memref<1x8xf32, #tpu.memory_space<vmem>>, %arg10: memref<8x40xbf16, #tpu.memory_space<vmem>>, %arg11: memref<8x8xbf16, #tpu.memory_space<vmem>>, %arg12: memref<1xf32, #tpu.memory_space<smem>>, %arg13: memref<1x128xf32, #tpu.memory_space<vmem>>) attributes {dimension_semantics = [#tpu.dimension_semantics<parallel>], iteration_bounds = array<i64: 1>, scalar_prefetch = 0 : i64, scratch_operands = 0 : i64, tpu.core_type = #tpu.core_type<tc>, window_params = [{transform_indices = @transform_0, window_bounds = array<i64: 128, 40>}, {transform_indices = @transform_1, window_bounds = array<i64: 128, 40>}, {pipeline_mode = #tpu.pipeline_mode<synchronous>, transform_indices = @transform_2, window_bounds = array<i64: 40, 32>}, {pipeline_mode = #tpu.pipeline_mode<synchronous>, transform_indices = @transform_3, window_bounds = array<i64: 40, 32>}, {pipeline_mode = #tpu.pipeline_mode<synchronous>, transform_indices = @transform_4, window_bounds = array<i64: 1, 32>}, {pipeline_mode = #tpu.pipeline_mode<synchronous>, transform_indices = @transform_5, window_bounds = array<i64: 32, 16>}, {pipeline_mode = #tpu.pipeline_mode<synchronous>, transform_indices = @transform_6, window_bounds = array<i64: 1, 16>}, {pipeline_mode = #tpu.pipeline_mode<synchronous>, transform_indices = @transform_7, window_bounds = array<i64: 16, 8>}, {pipeline_mode = #tpu.pipeline_mode<synchronous>, transform_indices = @transform_8, window_bounds = array<i64: 1, 8>}, {pipeline_mode = #tpu.pipeline_mode<synchronous>, transform_indices = @transform_9, window_bounds = array<i64: 8, 40>}, {pipeline_mode = #tpu.pipeline_mode<synchronous>, transform_indices = @transform_10, window_bounds = array<i64: 8, 8>}, {transform_indices = @transform_11, window_bounds = array<i64: 1>}, {transform_indices = @transform_12, window_bounds = array<i64: 1, 128>}]} {
    %c0 = arith.constant 0 : index
    %c0_0 = arith.constant 0 : index
    %0 = vector.load %arg1[%c0, %c0_0] : memref<128x40xbf16, #tpu.memory_space<vmem>>, vector<128x40xbf16>
    %c0_1 = arith.constant 0 : index
    %c0_2 = arith.constant 0 : index
    %1 = vector.load %arg2[%c0_1, %c0_2] : memref<128x40xbf16, #tpu.memory_space<vmem>>, vector<128x40xbf16>
    %2 = arith.mulf %0, %1 : vector<128x40xbf16>
    %c0_3 = arith.constant 0 : index
    %c0_4 = arith.constant 0 : index
    %3 = vector.load %arg3[%c0_3, %c0_4] : memref<40x32xbf16, #tpu.memory_space<vmem>>, vector<40x32xbf16>
    %cst = arith.constant dense<0.000000e+00> : vector<128x32xf32>
    %4 = tpu.matmul %0, %3, %cst {dimension_numbers = #tpu.dot_dimension_numbers<[1], [0], [0], [1], [0, 0, 1, 1], [], []>} : vector<128x40xbf16>, vector<40x32xbf16>, vector<128x32xf32> -> vector<128x32xf32>
    %c0_5 = arith.constant 0 : index
    %c0_6 = arith.constant 0 : index
    %5 = vector.load %arg4[%c0_5, %c0_6] : memref<40x32xbf16, #tpu.memory_space<vmem>>, vector<40x32xbf16>
    %cst_7 = arith.constant dense<0.000000e+00> : vector<128x32xf32>
    %6 = tpu.matmul %1, %5, %cst_7 {dimension_numbers = #tpu.dot_dimension_numbers<[1], [0], [0], [1], [0, 0, 1, 1], [], []>} : vector<128x40xbf16>, vector<40x32xbf16>, vector<128x32xf32> -> vector<128x32xf32>
    %7 = arith.addf %4, %6 : vector<128x32xf32>
    %c0_8 = arith.constant 0 : index
    %c0_9 = arith.constant 0 : index
    %8 = vector.load %arg5[%c0_8, %c0_9] : memref<1x32xf32, #tpu.memory_space<vmem>>, vector<1x32xf32>
    %9 = vector.broadcast %8 : vector<1x32xf32> to vector<128x32xf32>
    %10 = arith.addf %7, %9 : vector<128x32xf32>
    %cst_10 = arith.constant 0.000000e+00 : f32
    %11 = vector.broadcast %cst_10 : f32 to vector<128x32xf32>
    %12 = arith.maximumf %10, %11 : vector<128x32xf32>
    %13 = arith.truncf %12 : vector<128x32xf32> to vector<128x32xbf16>
    %c0_11 = arith.constant 0 : index
    %c0_12 = arith.constant 0 : index
    %14 = vector.load %arg6[%c0_11, %c0_12] : memref<32x16xbf16, #tpu.memory_space<vmem>>, vector<32x16xbf16>
    %cst_13 = arith.constant dense<0.000000e+00> : vector<128x16xf32>
    %15 = tpu.matmul %13, %14, %cst_13 {dimension_numbers = #tpu.dot_dimension_numbers<[1], [0], [0], [1], [0, 0, 1, 1], [], []>} : vector<128x32xbf16>, vector<32x16xbf16>, vector<128x16xf32> -> vector<128x16xf32>
    %c0_14 = arith.constant 0 : index
    %c0_15 = arith.constant 0 : index
    %16 = vector.load %arg7[%c0_14, %c0_15] : memref<1x16xf32, #tpu.memory_space<vmem>>, vector<1x16xf32>
    %17 = vector.broadcast %16 : vector<1x16xf32> to vector<128x16xf32>
    %18 = arith.addf %15, %17 : vector<128x16xf32>
    %cst_16 = arith.constant 0.000000e+00 : f32
    %19 = vector.broadcast %cst_16 : f32 to vector<128x16xf32>
    %20 = arith.maximumf %18, %19 : vector<128x16xf32>
    %21 = arith.truncf %20 : vector<128x16xf32> to vector<128x16xbf16>
    %c0_17 = arith.constant 0 : index
    %c0_18 = arith.constant 0 : index
    %22 = vector.load %arg8[%c0_17, %c0_18] : memref<16x8xbf16, #tpu.memory_space<vmem>>, vector<16x8xbf16>
    %cst_19 = arith.constant dense<0.000000e+00> : vector<128x8xf32>
    %23 = tpu.matmul %21, %22, %cst_19 {dimension_numbers = #tpu.dot_dimension_numbers<[1], [0], [0], [1], [0, 0, 1, 1], [], []>} : vector<128x16xbf16>, vector<16x8xbf16>, vector<128x8xf32> -> vector<128x8xf32>
    %c0_20 = arith.constant 0 : index
    %c0_21 = arith.constant 0 : index
    %24 = vector.load %arg9[%c0_20, %c0_21] : memref<1x8xf32, #tpu.memory_space<vmem>>, vector<1x8xf32>
    %25 = vector.broadcast %24 : vector<1x8xf32> to vector<128x8xf32>
    %26 = arith.addf %23, %25 : vector<128x8xf32>
    %cst_22 = arith.constant 0.000000e+00 : f32
    %27 = vector.broadcast %cst_22 : f32 to vector<128x8xf32>
    %28 = arith.maximumf %26, %27 : vector<128x8xf32>
    %c0_23 = arith.constant 0 : index
    %c0_24 = arith.constant 0 : index
    %29 = vector.load %arg10[%c0_23, %c0_24] : memref<8x40xbf16, #tpu.memory_space<vmem>>, vector<8x40xbf16>
    %cst_25 = arith.constant dense<0.000000e+00> : vector<8x128xf32>
    %30 = tpu.matmul %29, %2, %cst_25 {dimension_numbers = #tpu.dot_dimension_numbers<[1], [1], [0], [0], [0, 0, 1, 0], [], []>} : vector<8x40xbf16>, vector<128x40xbf16>, vector<8x128xf32> -> vector<8x128xf32>
    %c0_26 = arith.constant 0 : index
    %c0_27 = arith.constant 0 : index
    %31 = vector.load %arg11[%c0_26, %c0_27] : memref<8x8xbf16, #tpu.memory_space<vmem>>, vector<8x8xbf16>
    %32 = arith.truncf %28 : vector<128x8xf32> to vector<128x8xbf16>
    %cst_28 = arith.constant dense<0.000000e+00> : vector<8x128xf32>
    %33 = tpu.matmul %31, %32, %cst_28 {dimension_numbers = #tpu.dot_dimension_numbers<[1], [1], [0], [0], [0, 0, 1, 0], [], []>} : vector<8x8xbf16>, vector<128x8xbf16>, vector<8x128xf32> -> vector<8x128xf32>
    %34 = arith.addf %30, %33 : vector<8x128xf32>
    %35 = vector.extract_strided_slice %34 {offsets = [0, 0], sizes = [1, 128], strides = [1, 1]} : vector<8x128xf32> to vector<1x128xf32>
    %c0_29 = arith.constant 0 : index
    %36 = memref.load %arg12[%c0_29] : memref<1xf32, #tpu.memory_space<smem>>
    %37 = vector.broadcast %36 : f32 to vector<1x128xf32>
    %38 = arith.addf %35, %37 : vector<1x128xf32>
    %c0_30 = arith.constant 0 : index
    %c0_31 = arith.constant 0 : index
    %39 = vector.load %arg13[%c0_30, %c0_31] : memref<1x128xf32, #tpu.memory_space<vmem>>, vector<1x128xf32>
    tpu.vector_store %arg13[%c0_30, %c0_31], %38 {strides = array<i32>} : memref<1x128xf32, #tpu.memory_space<vmem>>, vector<1x128xf32>,
    return
  }
  func.func @transform_0(%arg0: i32) -> (i32, i32) {
    %c0_i32 = arith.constant 0 : i32
    %c0_i32_0 = arith.constant 0 : i32
    return %arg0, %c0_i32 : i32, i32
  }
  func.func @transform_1(%arg0: i32) -> (i32, i32) {
    %c0_i32 = arith.constant 0 : i32
    %c0_i32_0 = arith.constant 0 : i32
    return %arg0, %c0_i32 : i32, i32
  }
  func.func @transform_2(%arg0: i32) -> (i32, i32) {
    %c0_i32 = arith.constant 0 : i32
    %c0_i32_0 = arith.constant 0 : i32
    %c0_i32_1 = arith.constant 0 : i32
    return %c0_i32, %c0_i32_0 : i32, i32
  }
  func.func @transform_3(%arg0: i32) -> (i32, i32) {
    %c0_i32 = arith.constant 0 : i32
    %c0_i32_0 = arith.constant 0 : i32
    %c0_i32_1 = arith.constant 0 : i32
    return %c0_i32, %c0_i32_0 : i32, i32
  }
  func.func @transform_4(%arg0: i32) -> (i32, i32) {
    %c0_i32 = arith.constant 0 : i32
    %c0_i32_0 = arith.constant 0 : i32
    %c0_i32_1 = arith.constant 0 : i32
    return %c0_i32, %c0_i32_0 : i32, i32
  }
  func.func @transform_5(%arg0: i32) -> (i32, i32) {
    %c0_i32 = arith.constant 0 : i32
    %c0_i32_0 = arith.constant 0 : i32
    %c0_i32_1 = arith.constant 0 : i32
    return %c0_i32, %c0_i32_0 : i32, i32
  }
  func.func @transform_6(%arg0: i32) -> (i32, i32) {
    %c0_i32 = arith.constant 0 : i32
    %c0_i32_0 = arith.constant 0 : i32
    %c0_i32_1 = arith.constant 0 : i32
    return %c0_i32, %c0_i32_0 : i32, i32
  }
  func.func @transform_7(%arg0: i32) -> (i32, i32) {
    %c0_i32 = arith.constant 0 : i32
    %c0_i32_0 = arith.constant 0 : i32
    %c0_i32_1 = arith.constant 0 : i32
    return %c0_i32, %c0_i32_0 : i32, i32
  }
  func.func @transform_8(%arg0: i32) -> (i32, i32) {
    %c0_i32 = arith.constant 0 : i32
    %c0_i32_0 = arith.constant 0 : i32
    %c0_i32_1 = arith.constant 0 : i32
    return %c0_i32, %c0_i32_0 : i32, i32
  }
  func.func @transform_9(%arg0: i32) -> (i32, i32) {
    %c0_i32 = arith.constant 0 : i32
    %c0_i32_0 = arith.constant 0 : i32
    %c0_i32_1 = arith.constant 0 : i32
    return %c0_i32, %c0_i32_0 : i32, i32
  }
  func.func @transform_10(%arg0: i32) -> (i32, i32) {
    %c0_i32 = arith.constant 0 : i32
    %c0_i32_0 = arith.constant 0 : i32
    %c0_i32_1 = arith.constant 0 : i32
    return %c0_i32, %c0_i32_0 : i32, i32
  }
  func.func @transform_11(%arg0: i32) -> i32 {
    %c0_i32 = arith.constant 0 : i32
    %c0_i32_0 = arith.constant 0 : i32
    return %c0_i32 : i32
  }
  func.func @transform_12(%arg0: i32) -> (i32, i32) {
    %c0_i32 = arith.constant 0 : i32
    %c0_i32_0 = arith.constant 0 : i32
    return %c0_i32, %arg0 : i32, i32
  }
}

</mosaic_0001>

<llo_original>
// kernel: neumf_forward.1
$region0: #{neumf_forward.1}
  #allocation0 [shape = 'u32[]', space=smem, size = 0x4, offset = 0x4, fixed_abs, tag = 'smem constant byte address 0x4 - core index']
  #allocation1 [shape = 'u32[144,128]{1,0:T(1,128)}', space=vmem, size = 0x12000, scoped, tag = 'internal scratch']
  #allocation2 [shape = 'f32[1]{0:T(128)S(6)}', space=smem, size = 0x200, scoped, tag = 'scoped memory for neumf_forward.1']
  %s0 = inlined_call_operand.vmem [shape: bf16[128,40], index: 0, kind: input, shape index: {}]
  %s1 = inlined_call_operand.vmem [shape: bf16[128,40], index: 1, kind: input, shape index: {}]
  %s2 = inlined_call_operand.vmem [shape: bf16[40,32], index: 2, kind: input, shape index: {}]
  %s3 = inlined_call_operand.vmem [shape: bf16[40,32], index: 3, kind: input, shape index: {}]
  %s4 = inlined_call_operand.vmem [shape: f32[1,32], index: 4, kind: input, shape index: {}]
  %s5 = inlined_call_operand.vmem [shape: bf16[32,16], index: 5, kind: input, shape index: {}]
  %s6 = inlined_call_operand.vmem [shape: f32[1,16], index: 6, kind: input, shape index: {}]
  %s7 = inlined_call_operand.vmem [shape: bf16[16,8], index: 7, kind: input, shape index: {}]
  %s8 = inlined_call_operand.vmem [shape: f32[1,8], index: 8, kind: input, shape index: {}]
  %s9 = inlined_call_operand.vmem [shape: bf16[8,40], index: 9, kind: input, shape index: {}]
  %s10 = inlined_call_operand.vmem [shape: bf16[8,8], index: 10, kind: input, shape index: {}]
  %s11 = inlined_call_operand.<no memory space> [shape: f32[1], index: 11, kind: input, shape index: {}]
  %s12 = inlined_call_operand.vmem [shape: f32[1,128], index: 12, kind: output, shape index: {}]
  %s13 = sld [smem:[#allocation0]]
  $region58: #{neumf_forward.1} parent=0
    _
  %s15 = ssub.s32 1, %s13
  %s16 = scalar_select 0, %s15, %s13
  %17 = sst [smem:[#allocation2]] %s11
  // Predicated region
  $region2: #{neumf_forward.1} parent=0 // pred_check
    _
  $region3: #{neumf_forward.1} parent=0 // pred_check_branch
    %19 = sbr.rel (0) target = $region5
  $region4: #{neumf_forward.1} parent=0 // pred_region
    _
  $region5: #{neumf_forward.1} parent=0 // pred_fallthru
    _
  // Predicated region
  $region6: #{neumf_forward.1} parent=0 // pred_check
    _
  $region7: #{neumf_forward.1} parent=0 // pred_check_branch
    %21 = sbr.rel (0) target = $region9
  $region8: #{neumf_forward.1} parent=0 // pred_region
    _
  $region9: #{neumf_forward.1} parent=0 // pred_fallthru
    _
  // Predicated region
  $region10: #{neumf_forward.1} parent=0 // pred_check
    _
  $region11: #{neumf_forward.1} parent=0 // pred_check_branch
    %23 = sbr.rel (0) target = $region13
  $region12: #{neumf_forward.1} parent=0 // pred_region
    _
  $region13: #{neumf_forward.1} parent=0 // pred_fallthru
    _
  // Predicated region
  $region14: #{neumf_forward.1} parent=0 // pred_check
    _
  $region15: #{neumf_forward.1} parent=0 // pred_check_branch
    %25 = sbr.rel (0) target = $region17
  $region16: #{neumf_forward.1} parent=0 // pred_region
    _
  $region17: #{neumf_forward.1} parent=0 // pred_fallthru
    _
  // Predicated region
  $region18: #{neumf_forward.1} parent=0 // pred_check
    _
  $region19: #{neumf_forward.1} parent=0 // pred_check_branch
    %27 = sbr.rel (0) target = $region21
  $region20: #{neumf_forward.1} parent=0 // pred_region
    _
  $region21: #{neumf_forward.1} parent=0 // pred_fallthru
    _
  // Predicated region
  $region22: #{neumf_forward.1} parent=0 // pred_check
    _
  $region23: #{neumf_forward.1} parent=0 // pred_check_branch
    %29 = sbr.rel (0) target = $region25
  $region24: #{neumf_forward.1} parent=0 // pred_region
    _
  $region25: #{neumf_forward.1} parent=0 // pred_fallthru
    _
  // Predicated region
  $region26: #{neumf_forward.1} parent=0 // pred_check
    _
  $region27: #{neumf_forward.1} parent=0 // pred_check_branch
    %31 = sbr.rel (0) target = $region29
  $region28: #{neumf_forward.1} parent=0 // pred_region
    _
  $region29: #{neumf_forward.1} parent=0 // pred_fallthru
    _
  // Predicated region
  $region30: #{neumf_forward.1} parent=0 // pred_check
    _
  $region31: #{neumf_forward.1} parent=0 // pred_check_branch
    %33 = sbr.rel (0) target = $region33
  $region32: #{neumf_forward.1} parent=0 // pred_region
    _
  $region33: #{neumf_forward.1} parent=0 // pred_fallthru
    _
  // Predicated region
  $region34: #{neumf_forward.1} parent=0 // pred_check
    _
  $region35: #{neumf_forward.1} parent=0 // pred_check_branch
    %35 = sbr.rel (0) target = $region37
  $region36: #{neumf_forward.1} parent=0 // pred_region
    _
  $region37: #{neumf_forward.1} parent=0 // pred_fallthru
    _
  // Predicated region
  $region38: #{neumf_forward.1} parent=0 // pred_check
    _
  $region39: #{neumf_forward.1} parent=0 // pred_check_branch
    %37 = sbr.rel (0) target = $region41
  $region40: #{neumf_forward.1} parent=0 // pred_region
    _
  $region41: #{neumf_forward.1} parent=0 // pred_fallthru
    _
  // Predicated region
  $region42: #{neumf_forward.1} parent=0 // pred_check
    _
  $region43: #{neumf_forward.1} parent=0 // pred_check_branch
    %39 = sbr.rel (0) target = $region45
  $region44: #{neumf_forward.1} parent=0 // pred_region
    _
  $region45: #{neumf_forward.1} parent=0 // pred_fallthru
    _
  // Predicated region
  $region46: #{neumf_forward.1} parent=0 // pred_check
    _
  $region47: #{neumf_forward.1} parent=0 // pred_check_branch
    %41 = sbr.rel (0) target = $region49
  $region48: #{neumf_forward.1} parent=0 // pred_region
    _
  $region49: #{neumf_forward.1} parent=0 // pred_fallthru
    _
  %v43 = vld [vmem:[%s0] sm:$0xf]
  %v44 = vld [vmem:[%s0 + $0x4] sm:$0xf]
  %v45 = vld [vmem:[%s0 + $0x8] sm:$0xf]
  %v46 = vld [vmem:[%s0 + $0xc] sm:$0xf]
  %v47 = vld [vmem:[%s0 + $0x10] sm:$0xf]
  %v48 = vld [vmem:[%s0 + $0x14] sm:$0xf]
  %v49 = vld [vmem:[%s0 + $0x18] sm:$0xf]
  %v50 = vld [vmem:[%s0 + $0x1c] sm:$0xf]
  %v51 = vld [vmem:[%s0 + $0x20] sm:$0xf]
  %v52 = vld [vmem:[%s0 + $0x24] sm:$0xf]
  %v53 = vld [vmem:[%s0 + $0x28] sm:$0xf]
  %v54 = vld [vmem:[%s0 + $0x2c] sm:$0xf]
  %v55 = vld [vmem:[%s0 + $0x30] sm:$0xf]
  %v56 = vld [vmem:[%s0 + $0x34] sm:$0xf]
  %v57 = vld [vmem:[%s0 + $0x38] sm:$0xf]
  %v58 = vld [vmem:[%s0 + $0x3c] sm:$0xf]
  %v59 = vld [vmem:[%s1] sm:$0xf]
  %v60 = vld [vmem:[%s1 + $0x4] sm:$0xf]
  %v61 = vld [vmem:[%s1 + $0x8] sm:$0xf]
  %v62 = vld [vmem:[%s1 + $0xc] sm:$0xf]
  %v63 = vld [vmem:[%s1 + $0x10] sm:$0xf]
  %v64 = vld [vmem:[%s1 + $0x14] sm:$0xf]
  %v65 = vld [vmem:[%s1 + $0x18] sm:$0xf]
  %v66 = vld [vmem:[%s1 + $0x1c] sm:$0xf]
  %v67 = vld [vmem:[%s1 + $0x20] sm:$0xf]
  %v68 = vld [vmem:[%s1 + $0x24] sm:$0xf]
  %v69 = vld [vmem:[%s1 + $0x28] sm:$0xf]
  %v70 = vld [vmem:[%s1 + $0x2c] sm:$0xf]
  %v71 = vld [vmem:[%s1 + $0x30] sm:$0xf]
  %v72 = vld [vmem:[%s1 + $0x34] sm:$0xf]
  %v73 = vld [vmem:[%s1 + $0x38] sm:$0xf]
  %v74 = vld [vmem:[%s1 + $0x3c] sm:$0xf]
  %v75 = vmul.bf16 %v43, %v59
  %v76 = vmul.bf16 %v44, %v60
  %v77 = vmul.bf16 %v45, %v61
  %v78 = vmul.bf16 %v46, %v62
  %v79 = vmul.bf16 %v47, %v63
  %v80 = vmul.bf16 %v48, %v64
  %v81 = vmul.bf16 %v49, %v65
  %v82 = vmul.bf16 %v50, %v66
  %v83 = vmul.bf16 %v51, %v67
  %v84 = vmul.bf16 %v52, %v68
  %v85 = vmul.bf16 %v53, %v69
  %v86 = vmul.bf16 %v54, %v70
  %v87 = vmul.bf16 %v55, %v71
  %v88 = vmul.bf16 %v56, %v72
  %v89 = vmul.bf16 %v57, %v73
  %v90 = vmul.bf16 %v58, %v74
  %v91 = vld [vmem:[%s2] sm:$0xf]
  %v92 = vld [vmem:[%s2 + $0x4] sm:$0xf]
  %v93 = vld [vmem:[%s2 + $0x8] sm:$0xf]
  %v94 = vld [vmem:[%s2 + $0xc] sm:$0xf]
  %v95 = vld [vmem:[%s2 + $0x10] sm:$0xf]
  %v96 = vld [vmem:[%s3] sm:$0xf]
  %v97 = vld [vmem:[%s3 + $0x4] sm:$0xf]
  %v98 = vld [vmem:[%s3 + $0x8] sm:$0xf]
  %v99 = vld [vmem:[%s3 + $0xc] sm:$0xf]
  %v100 = vld [vmem:[%s3 + $0x10] sm:$0xf]
  %v117 = vunpack.c.l.b16 %v59
  %v118 = vunpack.c.l.b16 %v60
  %v119 = vunpack.c.l.b16 %v61
  %v120 = vunpack.c.l.b16 %v62
  %v121 = vunpack.c.l.b16 %v63
  %v122 = vunpack.c.l.b16 %v64
  %v123 = vunpack.c.l.b16 %v65
  %v124 = vunpack.c.l.b16 %v66
  %v125 = vunpack.c.l.b16 %v67
  %v126 = vunpack.c.l.b16 %v68
  %v127 = vunpack.c.l.b16 %v69
  %v128 = vunpack.c.l.b16 %v70
  %v129 = vunpack.c.l.b16 %v71
  %v130 = vunpack.c.l.b16 %v72
  %v131 = vunpack.c.l.b16 %v73
  %v132 = vunpack.c.l.b16 %v74
  %v133 = vpack.c.b16 %v118, %v117
  %v134 = vpack.c.b16 %v120, %v119
  %v135 = vpack.c.b16 %v122, %v121
  %v136 = vpack.c.b16 %v124, %v123
  %v137 = vpack.c.b16 %v126, %v125
  %v138 = vpack.c.b16 %v128, %v127
  %v139 = vpack.c.b16 %v130, %v129
  %v140 = vpack.c.b16 %v132, %v131
  %v146 = vunpack.c.l.b16 %v96
  %v147 = vunpack.c.l.b16 %v97
  %v148 = vunpack.c.l.b16 %v98
  %v149 = vunpack.c.l.b16 %v99
  %v150 = vunpack.c.l.b16 %v100
  %v151 = vpack.c.b16 %v147, %v146
  %v152 = vpack.c.b16 %v149, %v148
  %v153 = vpack.c.b16 %v150, %v150
  %vm156 = vcmask 326656
  %v158 = vsel %vm156, %v133, 0
  %v161 = vsel %vm156, %v134, 0
  %v164 = vsel %vm156, %v135, 0
  %v167 = vsel %vm156, %v136, 0
  %v170 = vsel %vm156, %v137, 0
  %v173 = vsel %vm156, %v138, 0
  %v176 = vsel %vm156, %v139, 0
  %v179 = vsel %vm156, %v140, 0
  %vm181 = vcmask 1043456
  %v183 = vsel %vm181, %v153, 0
  %185 = vmatprep.subr.bf16.mxu0 0
  %186 = vmatpush1.bf16.msra.mxu0 0
  %187 = vmatprep.subr.bf16.mxu0 0
  %188 = vmatpush1.bf16.msra.mxu0 0
  %189 = vmatprep.subr.bf16.mxu0 0
  %190 = vmatpush1.bf16.msra.mxu0 0
  %191 = vmatprep.subr.bf16.mxu0 0
  %192 = vmatpush1.bf16.msra.mxu0 0
  %193 = vmatprep.subr.bf16.mxu0 0
  %194 = vmatpush1.bf16.msra.mxu0 0
  %195 = vmatprep.subr.bf16.mxu0 0
  %196 = vmatpush1.bf16.msra.mxu0 %v183
  %197 = vmatprep.subr.bf16.mxu0 0
  %198 = vmatpush1.bf16.msra.mxu0 %v152
  %199 = vmatprep.subr.bf16.mxu0 0
  %200 = vmatpush1.bf16.msra.mxu0 %v151
  %201 = vmatprep.subr.bf16.mxu0 0
  %202 = vmatpush2.bf16.msra.mxu0 0
  %203 = vmatprep.subr.bf16.mxu0 0
  %204 = vmatpush2.bf16.msra.mxu0 0
  %205 = vmatprep.subr.bf16.mxu0 0
  %206 = vmatpush2.bf16.msra.mxu0 0
  %207 = vmatprep.subr.bf16.mxu0 0
  %208 = vmatpush2.bf16.msra.mxu0 0
  %209 = vmatprep.subr.bf16.mxu0 0
  %210 = vmatpush2.bf16.msra.mxu0 0
  %211 = vmatprep.subr.bf16.mxu0 0
  %212 = vmatpush2.bf16.msra.mxu0 0
  %213 = vmatprep.subr.bf16.mxu0 0
  %214 = vmatpush2.bf16.msra.mxu0 0
  %215 = vmatprep.subr.bf16.mxu0 0
  %216 = vmatpush2.bf16.msra.mxu0 0
  %217 = vmatprep.mubr.bf16.mxu0 0
  %218 = vmatmul.mubr.bf16.gmra.mxu0 %v158
  %v219 = vpop.f32.mrf.mxu0
  %v220 = vadd.f32 0.0, %v219
  %v221 = vpop.f32.mrf.mxu0
  %v222 = vpop.f32.mrf.mxu0
  %v223 = vadd.f32 0.0, %v222
  %v224 = vpop.f32.mrf.mxu0
  %225 = vmatprep.mubr.bf16.mxu0 0
  %226 = vmatmul.mubr.bf16.gmra.mxu0 %v161
  %v227 = vpop.f32.mrf.mxu0
  %v228 = vadd.f32 0.0, %v227
  %v229 = vpop.f32.mrf.mxu0
  %v230 = vpop.f32.mrf.mxu0
  %v231 = vadd.f32 0.0, %v230
  %v232 = vpop.f32.mrf.mxu0
  %233 = vmatprep.mubr.bf16.mxu0 0
  %234 = vmatmul.mubr.bf16.gmra.mxu0 %v164
  %v235 = vpop.f32.mrf.mxu0
  %v236 = vadd.f32 0.0, %v235
  %v237 = vpop.f32.mrf.mxu0
  %v238 = vpop.f32.mrf.mxu0
  %v239 = vadd.f32 0.0, %v238
  %v240 = vpop.f32.mrf.mxu0
  %241 = vmatprep.mubr.bf16.mxu0 0
  %242 = vmatmul.mubr.bf16.gmra.mxu0 %v167
  %v243 = vpop.f32.mrf.mxu0
  %v244 = vadd.f32 0.0, %v243
  %v245 = vpop.f32.mrf.mxu0
  %v246 = vpop.f32.mrf.mxu0
  %v247 = vadd.f32 0.0, %v246
  %v248 = vpop.f32.mrf.mxu0
  %249 = vmatprep.mubr.bf16.mxu0 0
  %250 = vmatmul.mubr.bf16.gmra.mxu0 %v170
  %v251 = vpop.f32.mrf.mxu0
  %v252 = vadd.f32 0.0, %v251
  %v253 = vpop.f32.mrf.mxu0
  %v254 = vpop.f32.mrf.mxu0
  %v255 = vadd.f32 0.0, %v254
  %v256 = vpop.f32.mrf.mxu0
  %257 = vmatprep.mubr.bf16.mxu0 0
  %258 = vmatmul.mubr.bf16.gmra.mxu0 %v173
  %v259 = vpop.f32.mrf.mxu0
  %v260 = vadd.f32 0.0, %v259
  %v261 = vpop.f32.mrf.mxu0
  %v262 = vpop.f32.mrf.mxu0
  %v263 = vadd.f32 0.0, %v262
  %v264 = vpop.f32.mrf.mxu0
  %265 = vmatprep.mubr.bf16.mxu0 0
  %266 = vmatmul.mubr.bf16.gmra.mxu0 %v176
  %v267 = vpop.f32.mrf.mxu0
  %v268 = vadd.f32 0.0, %v267
  %v269 = vpop.f32.mrf.mxu0
  %v270 = vpop.f32.mrf.mxu0
  %v271 = vadd.f32 0.0, %v270
  %v272 = vpop.f32.mrf.mxu0
  %273 = vmatprep.mubr.bf16.mxu0 0
  %274 = vmatmul.mubr.bf16.gmra.mxu0 %v179
  %v275 = vpop.f32.mrf.mxu0
  %v276 = vadd.f32 0.0, %v275
  %v277 = vpop.f32.mrf.mxu0
  %v278 = vpop.f32.mrf.mxu0
  %v279 = vadd.f32 0.0, %v278
  %v280 = vpop.f32.mrf.mxu0
  %281 = vdwg.mxu0
  %v298 = vunpack.c.l.b16 %v43
  %v299 = vunpack.c.l.b16 %v44
  %v300 = vunpack.c.l.b16 %v45
  %v301 = vunpack.c.l.b16 %v46
  %v302 = vunpack.c.l.b16 %v47
  %v303 = vunpack.c.l.b16 %v48
  %v304 = vunpack.c.l.b16 %v49
  %v305 = vunpack.c.l.b16 %v50
  %v306 = vunpack.c.l.b16 %v51
  %v307 = vunpack.c.l.b16 %v52
  %v308 = vunpack.c.l.b16 %v53
  %v309 = vunpack.c.l.b16 %v54
  %v310 = vunpack.c.l.b16 %v55
  %v311 = vunpack.c.l.b16 %v56
  %v312 = vunpack.c.l.b16 %v57
  %v313 = vunpack.c.l.b16 %v58
  %v314 = vpack.c.b16 %v299, %v298
  %v315 = vpack.c.b16 %v301, %v300
  %v316 = vpack.c.b16 %v303, %v302
  %v317 = vpack.c.b16 %v305, %v304
  %v318 = vpack.c.b16 %v307, %v306
  %v319 = vpack.c.b16 %v309, %v308
  %v320 = vpack.c.b16 %v311, %v310
  %v321 = vpack.c.b16 %v313, %v312
  %v327 = vunpack.c.l.b16 %v91
  %v328 = vunpack.c.l.b16 %v92
  %v329 = vunpack.c.l.b16 %v93
  %v330 = vunpack.c.l.b16 %v94
  %v331 = vunpack.c.l.b16 %v95
  %v332 = vpack.c.b16 %v328, %v327
  %v333 = vpack.c.b16 %v330, %v329
  %v334 = vpack.c.b16 %v331, %v331
  %v338 = vsel %vm156, %v314, 0
  %v341 = vsel %vm156, %v315, 0
  %v344 = vsel %vm156, %v316, 0
  %v347 = vsel %vm156, %v317, 0
  %v350 = vsel %vm156, %v318, 0
  %v353 = vsel %vm156, %v319, 0
  %v356 = vsel %vm156, %v320, 0
  %v359 = vsel %vm156, %v321, 0
  %v362 = vsel %vm181, %v334, 0
  %364 = vmatprep.subr.bf16.mxu0 0
  %365 = vmatpush1.bf16.msra.mxu0 0
  %366 = vmatprep.subr.bf16.mxu0 0
  %367 = vmatpush1.bf16.msra.mxu0 0
  %368 = vmatprep.subr.bf16.mxu0 0
  %369 = vmatpush1.bf16.msra.mxu0 0
  %370 = vmatprep.subr.bf16.mxu0 0
  %371 = vmatpush1.bf16.msra.mxu0 0
  %372 = vmatprep.subr.bf16.mxu0 0
  %373 = vmatpush1.bf16.msra.mxu0 0
  %374 = vmatprep.subr.bf16.mxu0 0
  %375 = vmatpush1.bf16.msra.mxu0 %v362
  %376 = vmatprep.subr.bf16.mxu0 0
  %377 = vmatpush1.bf16.msra.mxu0 %v333
  %378 = vmatprep.subr.bf16.mxu0 0
  %379 = vmatpush1.bf16.msra.mxu0 %v332
  %380 = vmatprep.subr.bf16.mxu0 0
  %381 = vmatpush2.bf16.msra.mxu0 0
  %382 = vmatprep.subr.bf16.mxu0 0
  %383 = vmatpush2.bf16.msra.mxu0 0
  %384 = vmatprep.subr.bf16.mxu0 0
  %385 = vmatpush2.bf16.msra.mxu0 0
  %386 = vmatprep.subr.bf16.mxu0 0
  %387 = vmatpush2.bf16.msra.mxu0 0
  %388 = vmatprep.subr.bf16.mxu0 0
  %389 = vmatpush2.bf16.msra.mxu0 0
  %390 = vmatprep.subr.bf16.mxu0 0
  %391 = vmatpush2.bf16.msra.mxu0 0
  %392 = vmatprep.subr.bf16.mxu0 0
  %393 = vmatpush2.bf16.msra.mxu0 0
  %394 = vmatprep.subr.bf16.mxu0 0
  %395 = vmatpush2.bf16.msra.mxu0 0
  %396 = vmatprep.mubr.bf16.mxu0 0
  %397 = vmatmul.mubr.bf16.gmra.mxu0 %v338
  %v398 = vpop.f32.mrf.mxu0
  %v399 = vadd.f32 %v220, %v398
  %v400 = vpop.f32.mrf.mxu0
  %v401 = vpop.f32.mrf.mxu0
  %v402 = vadd.f32 %v223, %v401
  %v403 = vpop.f32.mrf.mxu0
  %404 = vmatprep.mubr.bf16.mxu0 0
  %405 = vmatmul.mubr.bf16.gmra.mxu0 %v341
  %v406 = vpop.f32.mrf.mxu0
  %v407 = vadd.f32 %v228, %v406
  %v408 = vpop.f32.mrf.mxu0
  %v409 = vpop.f32.mrf.mxu0
  %v410 = vadd.f32 %v231, %v409
  %v411 = vpop.f32.mrf.mxu0
  %412 = vmatprep.mubr.bf16.mxu0 0
  %413 = vmatmul.mubr.bf16.gmra.mxu0 %v344
  %v414 = vpop.f32.mrf.mxu0
  %v415 = vadd.f32 %v236, %v414
  %v416 = vpop.f32.mrf.mxu0
  %v417 = vpop.f32.mrf.mxu0
  %v418 = vadd.f32 %v239, %v417
  %v419 = vpop.f32.mrf.mxu0
  %420 = vmatprep.mubr.bf16.mxu0 0
  %421 = vmatmul.mubr.bf16.gmra.mxu0 %v347
  %v422 = vpop.f32.mrf.mxu0
  %v423 = vadd.f32 %v244, %v422
  %v424 = vpop.f32.mrf.mxu0
  %v425 = vpop.f32.mrf.mxu0
  %v426 = vadd.f32 %v247, %v425
  %v427 = vpop.f32.mrf.mxu0
  %428 = vmatprep.mubr.bf16.mxu0 0
  %429 = vmatmul.mubr.bf16.gmra.mxu0 %v350
  %v430 = vpop.f32.mrf.mxu0
  %v431 = vadd.f32 %v252, %v430
  %v432 = vpop.f32.mrf.mxu0
  %v433 = vpop.f32.mrf.mxu0
  %v434 = vadd.f32 %v255, %v433
  %v435 = vpop.f32.mrf.mxu0
  %436 = vmatprep.mubr.bf16.mxu0 0
  %437 = vmatmul.mubr.bf16.gmra.mxu0 %v353
  %v438 = vpop.f32.mrf.mxu0
  %v439 = vadd.f32 %v260, %v438
  %v440 = vpop.f32.mrf.mxu0
  %v441 = vpop.f32.mrf.mxu0
  %v442 = vadd.f32 %v263, %v441
  %v443 = vpop.f32.mrf.mxu0
  %444 = vmatprep.mubr.bf16.mxu0 0
  %445 = vmatmul.mubr.bf16.gmra.mxu0 %v356
  %v446 = vpop.f32.mrf.mxu0
  %v447 = vadd.f32 %v268, %v446
  %v448 = vpop.f32.mrf.mxu0
  %v449 = vpop.f32.mrf.mxu0
  %v450 = vadd.f32 %v271, %v449
  %v451 = vpop.f32.mrf.mxu0
  %452 = vmatprep.mubr.bf16.mxu0 0
  %453 = vmatmul.mubr.bf16.gmra.mxu0 %v359
  %v454 = vpop.f32.mrf.mxu0
  %v455 = vadd.f32 %v276, %v454
  %v456 = vpop.f32.mrf.mxu0
  %v457 = vpop.f32.mrf.mxu0
  %v458 = vadd.f32 %v279, %v457
  %v459 = vpop.f32.mrf.mxu0
  %460 = vdwg.mxu0
  %v461 = vld [vmem:[%s4] sm:$0x1]
  %v463 = vlaneseq
  %v464 = vshrl.u32 %v463, 7
  %v465 = vsub.s32 0, %v464
  %v466 = vrot.slane %v461, %v465
  %v468 = vadd.f32 %v399, %v466
  %v469 = vadd.f32 %v402, %v466
  %v470 = vadd.f32 %v407, %v466
  %v471 = vadd.f32 %v410, %v466
  %v472 = vadd.f32 %v415, %v466
  %v473 = vadd.f32 %v418, %v466
  %v474 = vadd.f32 %v423, %v466
  %v475 = vadd.f32 %v426, %v466
  %v476 = vadd.f32 %v431, %v466
  %v477 = vadd.f32 %v434, %v466
  %v478 = vadd.f32 %v439, %v466
  %v479 = vadd.f32 %v442, %v466
  %v480 = vadd.f32 %v447, %v466
  %v481 = vadd.f32 %v450, %v466
  %v482 = vadd.f32 %v455, %v466
  %v483 = vadd.f32 %v458, %v466
  %v484 = vmax.f32 %v468, 0.0
  %v485 = vmax.f32 %v469, 0.0
  %v486 = vmax.f32 %v470, 0.0
  %v487 = vmax.f32 %v471, 0.0
  %v488 = vmax.f32 %v472, 0.0
  %v489 = vmax.f32 %v473, 0.0
  %v490 = vmax.f32 %v474, 0.0
  %v491 = vmax.f32 %v475, 0.0
  %v492 = vmax.f32 %v476, 0.0
  %v493 = vmax.f32 %v477, 0.0
  %v494 = vmax.f32 %v478, 0.0
  %v495 = vmax.f32 %v479, 0.0
  %v496 = vmax.f32 %v480, 0.0
  %v497 = vmax.f32 %v481, 0.0
  %v498 = vmax.f32 %v482, 0.0
  %v499 = vmax.f32 %v483, 0.0
  %v500 = vpack.c.bf16 %v485, %v484
  %v501 = vpack.c.bf16 %v487, %v486
  %v502 = vpack.c.bf16 %v489, %v488
  %v503 = vpack.c.bf16 %v491, %v490
  %v504 = vpack.c.bf16 %v493, %v492
  %v505 = vpack.c.bf16 %v495, %v494
  %v506 = vpack.c.bf16 %v497, %v496
  %v507 = vpack.c.bf16 %v499, %v498
  %v508 = vld [vmem:[%s5] sm:$0xf]
  %v509 = vld [vmem:[%s5 + $0x4] sm:$0xf]
  %v510 = vld [vmem:[%s5 + $0x8] sm:$0xf]
  %v511 = vld [vmem:[%s5 + $0xc] sm:$0xf]
  %v512 = vld [vmem:[%s6] sm:$0x1]
  %v514 = vlaneseq
  %v515 = vshrl.u32 %v514, 7
  %v516 = vsub.s32 0, %v515
  %v517 = vrot.slane %v512, %v516
  %v523 = vunpack.c.l.b16 %v508
  %v524 = vunpack.c.l.b16 %v509
  %v525 = vunpack.c.l.b16 %v510
  %v526 = vunpack.c.l.b16 %v511
  %v527 = vpack.c.b16 %v524, %v523
  %v528 = vpack.c.b16 %v526, %v525
  %vm531 = vcmask 261120
  %v533 = vsel %vm531, %v500, 0
  %v536 = vsel %vm531, %v501, 0
  %v539 = vsel %vm531, %v502, 0
  %v542 = vsel %vm531, %v503, 0
  %v545 = vsel %vm531, %v504, 0
  %v548 = vsel %vm531, %v505, 0
  %v551 = vsel %vm531, %v506, 0
  %v554 = vsel %vm531, %v507, 0
  %556 = vmatprep.subr.bf16.mxu0 0
  %557 = vmatpush1.bf16.msra.mxu0 0
  %558 = vmatprep.subr.bf16.mxu0 0
  %559 = vmatpush1.bf16.msra.mxu0 0
  %560 = vmatprep.subr.bf16.mxu0 0
  %561 = vmatpush1.bf16.msra.mxu0 0
  %562 = vmatprep.subr.bf16.mxu0 0
  %563 = vmatpush1.bf16.msra.mxu0 0
  %564 = vmatprep.subr.bf16.mxu0 0
  %565 = vmatpush1.bf16.msra.mxu0 0
  %566 = vmatprep.subr.bf16.mxu0 0
  %567 = vmatpush1.bf16.msra.mxu0 0
  %568 = vmatprep.subr.bf16.mxu0 0
  %569 = vmatpush1.bf16.msra.mxu0 %v528
  %570 = vmatprep.subr.bf16.mxu0 0
  %571 = vmatpush1.bf16.msra.mxu0 %v527
  %572 = vmatprep.subr.bf16.mxu0 0
  %573 = vmatpush2.bf16.msra.mxu0 0
  %574 = vmatprep.subr.bf16.mxu0 0
  %575 = vmatpush2.bf16.msra.mxu0 0
  %576 = vmatprep.subr.bf16.mxu0 0
  %577 = vmatpush2.bf16.msra.mxu0 0
  %578 = vmatprep.subr.bf16.mxu0 0
  %579 = vmatpush2.bf16.msra.mxu0 0
  %580 = vmatprep.subr.bf16.mxu0 0
  %581 = vmatpush2.bf16.msra.mxu0 0
  %582 = vmatprep.subr.bf16.mxu0 0
  %583 = vmatpush2.bf16.msra.mxu0 0
  %584 = vmatprep.subr.bf16.mxu0 0
  %585 = vmatpush2.bf16.msra.mxu0 0
  %586 = vmatprep.subr.bf16.mxu0 0
  %587 = vmatpush2.bf16.msra.mxu0 0
  %588 = vmatprep.mubr.bf16.mxu0 0
  %589 = vmatmul.mubr.bf16.gmra.mxu0 %v533
  %v590 = vpop.f32.mrf.mxu0
  %v591 = vadd.f32 %v517, %v590
  %v592 = vpop.f32.mrf.mxu0
  %v593 = vpop.f32.mrf.mxu0
  %v594 = vadd.f32 %v517, %v593
  %v595 = vpop.f32.mrf.mxu0
  %596 = vmatprep.mubr.bf16.mxu0 0
  %597 = vmatmul.mubr.bf16.gmra.mxu0 %v536
  %v598 = vpop.f32.mrf.mxu0
  %v599 = vadd.f32 %v517, %v598
  %v600 = vpop.f32.mrf.mxu0
  %v601 = vpop.f32.mrf.mxu0
  %v602 = vadd.f32 %v517, %v601
  %v603 = vpop.f32.mrf.mxu0
  %604 = vmatprep.mubr.bf16.mxu0 0
  %605 = vmatmul.mubr.bf16.gmra.mxu0 %v539
  %v606 = vpop.f32.mrf.mxu0
  %v607 = vadd.f32 %v517, %v606
  %v608 = vpop.f32.mrf.mxu0
  %v609 = vpop.f32.mrf.mxu0
  %v610 = vadd.f32 %v517, %v609
  %v611 = vpop.f32.mrf.mxu0
  %612 = vmatprep.mubr.bf16.mxu0 0
  %613 = vmatmul.mubr.bf16.gmra.mxu0 %v542
  %v614 = vpop.f32.mrf.mxu0
  %v615 = vadd.f32 %v517, %v614
  %v616 = vpop.f32.mrf.mxu0
  %v617 = vpop.f32.mrf.mxu0
  %v618 = vadd.f32 %v517, %v617
  %v619 = vpop.f32.mrf.mxu0
  %620 = vmatprep.mubr.bf16.mxu0 0
  %621 = vmatmul.mubr.bf16.gmra.mxu0 %v545
  %v622 = vpop.f32.mrf.mxu0
  %v623 = vadd.f32 %v517, %v622
  %v624 = vpop.f32.mrf.mxu0
  %v625 = vpop.f32.mrf.mxu0
  %v626 = vadd.f32 %v517, %v625
  %v627 = vpop.f32.mrf.mxu0
  %628 = vmatprep.mubr.bf16.mxu0 0
  %629 = vmatmul.mubr.bf16.gmra.mxu0 %v548
  %v630 = vpop.f32.mrf.mxu0
  %v631 = vadd.f32 %v517, %v630
  %v632 = vpop.f32.mrf.mxu0
  %v633 = vpop.f32.mrf.mxu0
  %v634 = vadd.f32 %v517, %v633
  %v635 = vpop.f32.mrf.mxu0
  %636 = vmatprep.mubr.bf16.mxu0 0
  %637 = vmatmul.mubr.bf16.gmra.mxu0 %v551
  %v638 = vpop.f32.mrf.mxu0
  %v639 = vadd.f32 %v517, %v638
  %v640 = vpop.f32.mrf.mxu0
  %v641 = vpop.f32.mrf.mxu0
  %v642 = vadd.f32 %v517, %v641
  %v643 = vpop.f32.mrf.mxu0
  %644 = vmatprep.mubr.bf16.mxu0 0
  %645 = vmatmul.mubr.bf16.gmra.mxu0 %v554
  %v646 = vpop.f32.mrf.mxu0
  %v647 = vadd.f32 %v517, %v646
  %v648 = vpop.f32.mrf.mxu0
  %v649 = vpop.f32.mrf.mxu0
  %v650 = vadd.f32 %v517, %v649
  %v651 = vpop.f32.mrf.mxu0
  %652 = vdwg.mxu0
  %v653 = vmax.f32 %v591, 0.0
  %v654 = vmax.f32 %v594, 0.0
  %v655 = vmax.f32 %v599, 0.0
  %v656 = vmax.f32 %v602, 0.0
  %v657 = vmax.f32 %v607, 0.0
  %v658 = vmax.f32 %v610, 0.0
  %v659 = vmax.f32 %v615, 0.0
  %v660 = vmax.f32 %v618, 0.0
  %v661 = vmax.f32 %v623, 0.0
  %v662 = vmax.f32 %v626, 0.0
  %v663 = vmax.f32 %v631, 0.0
  %v664 = vmax.f32 %v634, 0.0
  %v665 = vmax.f32 %v639, 0.0
  %v666 = vmax.f32 %v642, 0.0
  %v667 = vmax.f32 %v647, 0.0
  %v668 = vmax.f32 %v650, 0.0
  %v669 = vpack.c.bf16 %v654, %v653
  %v670 = vpack.c.bf16 %v656, %v655
  %v671 = vpack.c.bf16 %v658, %v657
  %v672 = vpack.c.bf16 %v660, %v659
  %v673 = vpack.c.bf16 %v662, %v661
  %v674 = vpack.c.bf16 %v664, %v663
  %v675 = vpack.c.bf16 %v666, %v665
  %v676 = vpack.c.bf16 %v668, %v667
  %v677 = vld [vmem:[%s7] sm:$0xf]
  %v678 = vld [vmem:[%s7 + $0x4] sm:$0xf]
  %v679 = vld [vmem:[%s8] sm:$0x1]
  %v681 = vlaneseq
  %v682 = vshrl.u32 %v681, 7
  %v683 = vsub.s32 0, %v682
  %v684 = vrot.slane %v679, %v683
  %v688 = vunpack.c.l.b16 %v677
  %v689 = vunpack.c.l.b16 %v678
  %v690 = vpack.c.b16 %v689, %v688
  %vm692 = vcmask 130048
  %v694 = vsel %vm692, %v669, 0
  %v697 = vsel %vm692, %v670, 0
  %v700 = vsel %vm692, %v671, 0
  %v703 = vsel %vm692, %v672, 0
  %v706 = vsel %vm692, %v673, 0
  %v709 = vsel %vm692, %v674, 0
  %v712 = vsel %vm692, %v675, 0
  %v715 = vsel %vm692, %v676, 0
  %717 = vmatprep.subr.bf16.mxu0 0
  %718 = vmatpush1.bf16.msra.mxu0 0
  %719 = vmatprep.subr.bf16.mxu0 0
  %720 = vmatpush1.bf16.msra.mxu0 0
  %721 = vmatprep.subr.bf16.mxu0 0
  %722 = vmatpush1.bf16.msra.mxu0 0
  %723 = vmatprep.subr.bf16.mxu0 0
  %724 = vmatpush1.bf16.msra.mxu0 0
  %725 = vmatprep.subr.bf16.mxu0 0
  %726 = vmatpush1.bf16.msra.mxu0 0
  %727 = vmatprep.subr.bf16.mxu0 0
  %728 = vmatpush1.bf16.msra.mxu0 0
  %729 = vmatprep.subr.bf16.mxu0 0
  %730 = vmatpush1.bf16.msra.mxu0 0
  %731 = vmatprep.subr.bf16.mxu0 0
  %732 = vmatpush1.bf16.msra.mxu0 %v690
  %733 = vmatprep.subr.bf16.mxu0 0
  %734 = vmatpush2.bf16.msra.mxu0 0
  %735 = vmatprep.subr.bf16.mxu0 0
  %736 = vmatpush2.bf16.msra.mxu0 0
  %737 = vmatprep.subr.bf16.mxu0 0
  %738 = vmatpush2.bf16.msra.mxu0 0
  %739 = vmatprep.subr.bf16.mxu0 0
  %740 = vmatpush2.bf16.msra.mxu0 0
  %741 = vmatprep.subr.bf16.mxu0 0
  %742 = vmatpush2.bf16.msra.mxu0 0
  %743 = vmatprep.subr.bf16.mxu0 0
  %744 = vmatpush2.bf16.msra.mxu0 0
  %745 = vmatprep.subr.bf16.mxu0 0
  %746 = vmatpush2.bf16.msra.mxu0 0
  %747 = vmatprep.subr.bf16.mxu0 0
  %748 = vmatpush2.bf16.msra.mxu0 0
  %749 = vmatprep.mubr.bf16.mxu0 0
  %750 = vmatmul.mubr.bf16.gmra.mxu0 %v694
  %v751 = vpop.f32.mrf.mxu0
  %v752 = vadd.f32 %v684, %v751
  %v753 = vpop.f32.mrf.mxu0
  %v754 = vpop.f32.mrf.mxu0
  %v755 = vadd.f32 %v684, %v754
  %v756 = vpop.f32.mrf.mxu0
  %757 = vmatprep.mubr.bf16.mxu0 0
  %758 = vmatmul.mubr.bf16.gmra.mxu0 %v697
  %v759 = vpop.f32.mrf.mxu0
  %v760 = vadd.f32 %v684, %v759
  %v761 = vpop.f32.mrf.mxu0
  %v762 = vpop.f32.mrf.mxu0
  %v763 = vadd.f32 %v684, %v762
  %v764 = vpop.f32.mrf.mxu0
  %765 = vmatprep.mubr.bf16.mxu0 0
  %766 = vmatmul.mubr.bf16.gmra.mxu0 %v700
  %v767 = vpop.f32.mrf.mxu0
  %v768 = vadd.f32 %v684, %v767
  %v769 = vpop.f32.mrf.mxu0
  %v770 = vpop.f32.mrf.mxu0
  %v771 = vadd.f32 %v684, %v770
  %v772 = vpop.f32.mrf.mxu0
  %773 = vmatprep.mubr.bf16.mxu0 0
  %774 = vmatmul.mubr.bf16.gmra.mxu0 %v703
  %v775 = vpop.f32.mrf.mxu0
  %v776 = vadd.f32 %v684, %v775
  %v777 = vpop.f32.mrf.mxu0
  %v778 = vpop.f32.mrf.mxu0
  %v779 = vadd.f32 %v684, %v778
  %v780 = vpop.f32.mrf.mxu0
  %781 = vmatprep.mubr.bf16.mxu0 0
  %782 = vmatmul.mubr.bf16.gmra.mxu0 %v706
  %v783 = vpop.f32.mrf.mxu0
  %v784 = vadd.f32 %v684, %v783
  %v785 = vpop.f32.mrf.mxu0
  %v786 = vpop.f32.mrf.mxu0
  %v787 = vadd.f32 %v684, %v786
  %v788 = vpop.f32.mrf.mxu0
  %789 = vmatprep.mubr.bf16.mxu0 0
  %790 = vmatmul.mubr.bf16.gmra.mxu0 %v709
  %v791 = vpop.f32.mrf.mxu0
  %v792 = vadd.f32 %v684, %v791
  %v793 = vpop.f32.mrf.mxu0
  %v794 = vpop.f32.mrf.mxu0
  %v795 = vadd.f32 %v684, %v794
  %v796 = vpop.f32.mrf.mxu0
  %797 = vmatprep.mubr.bf16.mxu0 0
  %798 = vmatmul.mubr.bf16.gmra.mxu0 %v712
  %v799 = vpop.f32.mrf.mxu0
  %v800 = vadd.f32 %v684, %v799
  %v801 = vpop.f32.mrf.mxu0
  %v802 = vpop.f32.mrf.mxu0
  %v803 = vadd.f32 %v684, %v802
  %v804 = vpop.f32.mrf.mxu0
  %805 = vmatprep.mubr.bf16.mxu0 0
  %806 = vmatmul.mubr.bf16.gmra.mxu0 %v715
  %v807 = vpop.f32.mrf.mxu0
  %v808 = vadd.f32 %v684, %v807
  %v809 = vpop.f32.mrf.mxu0
  %v810 = vpop.f32.mrf.mxu0
  %v811 = vadd.f32 %v684, %v810
  %v812 = vpop.f32.mrf.mxu0
  %813 = vdwg.mxu0
  %v814 = vmax.f32 %v752, 0.0
  %v815 = vmax.f32 %v755, 0.0
  %v816 = vmax.f32 %v760, 0.0
  %v817 = vmax.f32 %v763, 0.0
  %v818 = vmax.f32 %v768, 0.0
  %v819 = vmax.f32 %v771, 0.0
  %v820 = vmax.f32 %v776, 0.0
  %v821 = vmax.f32 %v779, 0.0
  %v822 = vmax.f32 %v784, 0.0
  %v823 = vmax.f32 %v787, 0.0
  %v824 = vmax.f32 %v792, 0.0
  %v825 = vmax.f32 %v795, 0.0
  %v826 = vmax.f32 %v800, 0.0
  %v827 = vmax.f32 %v803, 0.0
  %v828 = vmax.f32 %v808, 0.0
  %v829 = vmax.f32 %v811, 0.0
  %v830 = vld [vmem:[%s9] sm:$0xf]
  %v831 = vld [vmem:[%s10] sm:$0xf]
  %v832 = vpack.c.bf16 %v815, %v814
  %v833 = vpack.c.bf16 %v817, %v816
  %v834 = vpack.c.bf16 %v819, %v818
  %v835 = vpack.c.bf16 %v821, %v820
  %v836 = vpack.c.bf16 %v823, %v822
  %v837 = vpack.c.bf16 %v825, %v824
  %v838 = vpack.c.bf16 %v827, %v826
  %v839 = vpack.c.bf16 %v829, %v828
  %vm840 = vcmask 64512
  %v842 = vsel %vm840, %v831, 0
  %v845 = vsel %vm840, %v832, 0
  %v848 = vsel %vm840, %v833, 0
  %v851 = vsel %vm840, %v834, 0
  %v854 = vsel %vm840, %v835, 0
  %v857 = vsel %vm840, %v836, 0
  %v860 = vsel %vm840, %v837, 0
  %v863 = vsel %vm840, %v838, 0
  %v866 = vsel %vm840, %v839, 0
  %868 = vmatprep.subr.bf16.mxu0 0
  %869 = vmatpush1.bf16.xpose.msra.mxu0 %v866
  %870 = vmatprep.subr.bf16.mxu0 0
  %871 = vmatpush1.bf16.xpose.msra.mxu0 %v863
  %872 = vmatprep.subr.bf16.mxu0 0
  %873 = vmatpush1.bf16.xpose.msra.mxu0 %v860
  %874 = vmatprep.subr.bf16.mxu0 0
  %875 = vmatpush1.bf16.xpose.msra.mxu0 %v857
  %876 = vmatprep.subr.bf16.mxu0 0
  %877 = vmatpush1.bf16.xpose.msra.mxu0 %v854
  %878 = vmatprep.subr.bf16.mxu0 0
  %879 = vmatpush1.bf16.xpose.msra.mxu0 %v851
  %880 = vmatprep.subr.bf16.mxu0 0
  %881 = vmatpush1.bf16.xpose.msra.mxu0 %v848
  %882 = vmatprep.subr.bf16.mxu0 0
  %883 = vmatpush1.bf16.xpose.msra.mxu0 %v845
  %884 = vmatprep.subr.bf16.mxu0 0
  %885 = vmatpush2.bf16.xpose.msra.mxu0 0
  %886 = vmatprep.subr.bf16.mxu0 0
  %887 = vmatpush2.bf16.xpose.msra.mxu0 0
  %888 = vmatprep.subr.bf16.mxu0 0
  %889 = vmatpush2.bf16.xpose.msra.mxu0 0
  %890 = vmatprep.subr.bf16.mxu0 0
  %891 = vmatpush2.bf16.xpose.msra.mxu0 0
  %892 = vmatprep.subr.bf16.mxu0 0
  %893 = vmatpush2.bf16.xpose.msra.mxu0 0
  %894 = vmatprep.subr.bf16.mxu0 0
  %895 = vmatpush2.bf16.xpose.msra.mxu0 0
  %896 = vmatprep.subr.bf16.mxu0 0
  %897 = vmatpush2.bf16.xpose.msra.mxu0 0
  %898 = vmatprep.subr.bf16.mxu0 0
  %899 = vmatpush2.bf16.xpose.msra.mxu0 0
  %900 = vmatprep.mubr.bf16.mxu0 0
  %901 = vmatmul.mubr.bf16.gmra.mxu0 %v842
  %v902 = vpop.f32.mrf.mxu0
  %v903 = vadd.f32 0.0, %v902
  %v904 = vpop.f32.mrf.mxu0
  %v905 = vpop.f32.mrf.mxu0
  %v906 = vpop.f32.mrf.mxu0
  %907 = vdwg.mxu0
  %v924 = vunpack.c.l.b16 %v75
  %v925 = vunpack.c.l.b16 %v76
  %v926 = vunpack.c.l.b16 %v77
  %v927 = vunpack.c.l.b16 %v78
  %v928 = vunpack.c.l.b16 %v79
  %v929 = vunpack.c.l.b16 %v80
  %v930 = vunpack.c.l.b16 %v81
  %v931 = vunpack.c.l.b16 %v82
  %v932 = vunpack.c.l.b16 %v83
  %v933 = vunpack.c.l.b16 %v84
  %v934 = vunpack.c.l.b16 %v85
  %v935 = vunpack.c.l.b16 %v86
  %v936 = vunpack.c.l.b16 %v87
  %v937 = vunpack.c.l.b16 %v88
  %v938 = vunpack.c.l.b16 %v89
  %v939 = vunpack.c.l.b16 %v90
  %v940 = vpack.c.b16 %v925, %v924
  %v941 = vpack.c.b16 %v927, %v926
  %v942 = vpack.c.b16 %v929, %v928
  %v943 = vpack.c.b16 %v931, %v930
  %v944 = vpack.c.b16 %v933, %v932
  %v945 = vpack.c.b16 %v935, %v934
  %v946 = vpack.c.b16 %v937, %v936
  %v947 = vpack.c.b16 %v939, %v938
  %v949 = vsel %vm156, %v830, 0
  %v952 = vsel %vm156, %v940, 0
  %v955 = vsel %vm156, %v941, 0
  %v958 = vsel %vm156, %v942, 0
  %v961 = vsel %vm156, %v943, 0
  %v964 = vsel %vm156, %v944, 0
  %v967 = vsel %vm156, %v945, 0
  %v970 = vsel %vm156, %v946, 0
  %v973 = vsel %vm156, %v947, 0
  %975 = vmatprep.subr.bf16.mxu0 0
  %976 = vmatpush1.bf16.xpose.msra.mxu0 %v973
  %977 = vmatprep.subr.bf16.mxu0 0
  %978 = vmatpush1.bf16.xpose.msra.mxu0 %v970
  %979 = vmatprep.subr.bf16.mxu0 0
  %980 = vmatpush1.bf16.xpose.msra.mxu0 %v967
  %981 = vmatprep.subr.bf16.mxu0 0
  %982 = vmatpush1.bf16.xpose.msra.mxu0 %v964
  %983 = vmatprep.subr.bf16.mxu0 0
  %984 = vmatpush1.bf16.xpose.msra.mxu0 %v961
  %985 = vmatprep.subr.bf16.mxu0 0
  %986 = vmatpush1.bf16.xpose.msra.mxu0 %v958
  %987 = vmatprep.subr.bf16.mxu0 0
  %988 = vmatpush1.bf16.xpose.msra.mxu0 %v955
  %989 = vmatprep.subr.bf16.mxu0 0
  %990 = vmatpush1.bf16.xpose.msra.mxu0 %v952
  %991 = vmatprep.subr.bf16.mxu0 0
  %992 = vmatpush2.bf16.xpose.msra.mxu0 0
  %993 = vmatprep.subr.bf16.mxu0 0
  %994 = vmatpush2.bf16.xpose.msra.mxu0 0
  %995 = vmatprep.subr.bf16.mxu0 0
  %996 = vmatpush2.bf16.xpose.msra.mxu0 0
  %997 = vmatprep.subr.bf16.mxu0 0
  %998 = vmatpush2.bf16.xpose.msra.mxu0 0
  %999 = vmatprep.subr.bf16.mxu0 0
  %1000 = vmatpush2.bf16.xpose.msra.mxu0 0
  %1001 = vmatprep.subr.bf16.mxu0 0
  %1002 = vmatpush2.bf16.xpose.msra.mxu0 0
  %1003 = vmatprep.subr.bf16.mxu0 0
  %1004 = vmatpush2.bf16.xpose.msra.mxu0 0
  %1005 = vmatprep.subr.bf16.mxu0 0
  %1006 = vmatpush2.bf16.xpose.msra.mxu0 0
  %1007 = vmatprep.mubr.bf16.mxu0 0
  %1008 = vmatmul.mubr.bf16.gmra.mxu0 %v949
  %v1009 = vpop.f32.mrf.mxu0
  %v1010 = vadd.f32 %v903, %v1009
  %v1011 = vpop.f32.mrf.mxu0
  %v1012 = vpop.f32.mrf.mxu0
  %v1013 = vpop.f32.mrf.mxu0
  %1014 = vdwg.mxu0
  %s1015 = sld [smem:[#allocation2]]
  %v1016 = vstv %s1015
  %v1017 = vadd.f32 %v1010, %v1016
  %1018 = vst [vmem:[%s12] sm:$0x1] %v1017
  // Predicated region
  $region50: #{neumf_forward.1} parent=0 // pred_check
    _
  $region51: #{neumf_forward.1} parent=0 // pred_check_branch
    %1020 = sbr.rel (0) target = $region53
  $region52: #{neumf_forward.1} parent=0 // pred_region
    _
  $region53: #{neumf_forward.1} parent=0 // pred_fallthru
    _
  // Predicated region
  $region54: #{neumf_forward.1} parent=0 // pred_check
    _
  $region55: #{neumf_forward.1} parent=0 // pred_check_branch
    %1022 = sbr.rel (0) target = $region57
  $region56: #{neumf_forward.1} parent=0 // pred_region
    _
  $region57: #{neumf_forward.1} parent=0 // pred_fallthru
    _

</llo_original>
